<compile_context>
chip_gen: v5e
topology: v5e:2x2
jax: 0.10.0
libtpu: 0.0.40
codegen_flags: <defaults>
</compile_context>

<pallas_src>
import functools
import math

import jax
import jax.numpy as jnp
import numpy as np
from jax.experimental import pallas as pl
from jax.experimental.pallas import tpu as pltpu


def _round_up(x, m):
    return -(-x // m) * m


# ---------------------------------------------------------------------------
# GCN branch: batch-independent, runs once per forward (tiny operands).
# Emits g already transposed to (C2, N) so the streaming kernel's classifier
# matmul needs no per-tile transpose and no extra XLA transpose launch.
# ---------------------------------------------------------------------------
def _gcn_kernel(word_ref, adj_ref, w1_ref, w2_ref, gt_ref):
    # gc1: adj @ (word_features @ W1)
    sup1 = jnp.dot(word_ref[...], w1_ref[...],
                   preferred_element_type=jnp.float32)                    # (N, C1)
    x1 = jnp.dot(adj_ref[...], sup1, preferred_element_type=jnp.float32)  # (N, C1)
    # LeakyReLU(0.2)
    x1 = jnp.where(x1 > 0, x1, 0.2 * x1)
    # gc2: adj @ (x1 @ W2)
    sup2 = jnp.dot(x1, w2_ref[...], preferred_element_type=jnp.float32)   # (N, C2)
    g = jnp.dot(adj_ref[...], sup2, preferred_element_type=jnp.float32)   # (N, C2)
    gt_ref[...] = g.T                                                     # (C2, N)


def _gcn(word_features, adj, w1, w2):
    n_cls = word_features.shape[0]
    c2 = w2.shape[1]
    vmem = pl.BlockSpec(memory_space=pltpu.MemorySpace.VMEM)
    return pl.pallas_call(
        _gcn_kernel,
        out_shape=jax.ShapeDtypeStruct((c2, n_cls), jnp.float32),
        in_specs=[vmem, vmem, vmem, vmem],
        out_specs=vmem,
    )(word_features, adj, w1, w2)


# ---------------------------------------------------------------------------
# Streaming classifier kernels (NCHW feature map, spatial axis on lanes).
#
# Single-shot variant: the whole (tb, C2, HW) block is resident; one cross-
# lane max reduce + one MXU matmul per batch tile.  No accumulator, no mask.
# ---------------------------------------------------------------------------
def _pool_cls_single_kernel(fm_ref, gt_ref, out_ref):
    # Max over the spatial (lane) axis in the stream dtype (exact selection),
    # then cast the small pooled (tb, C2) to f32 for the MXU matmul.  Doing the
    # reduce before the cast avoids a block-sized f32 temporary for bf16.
    pooled = jnp.max(fm_ref[...], axis=-1).astype(jnp.float32)            # (tb, C2)
    out_ref[...] = jnp.dot(pooled, gt_ref[...],
                           preferred_element_type=jnp.float32)            # (tb, N)


# Tiled variant: elementwise running max (VPU) into a (tb, C2, thw) scratch;
# the single XLU lane reduce + classifier matmul happen only at j == last.
def _pool_cls_tiled_kernel(fm_ref, gt_ref, out_ref, mx_ref, *, hw_total):
    j = pl.program_id(1)
    last = pl.num_programs(1) - 1
    thw = fm_ref.shape[2]

    @pl.when(j == 0)
    def _init():
        mx_ref[...] = jnp.full(mx_ref.shape, -jnp.inf, mx_ref.dtype)

    if hw_total % thw != 0:
        # Only the final spatial tile is padded; gate the mask there so the
        # iota/compare/select VALU work is not paid on every step.
        @pl.when(j != last)
        def _full_tile():
            mx_ref[...] = jnp.maximum(mx_ref[...], fm_ref[...])

        @pl.when(j == last)
        def _partial_tile():
            lane = jax.lax.broadcasted_iota(jnp.int32, fm_ref.shape, 2) + j * thw
            tile = jnp.where(lane < hw_total, fm_ref[...],
                             jnp.array(-jnp.inf, fm_ref.dtype))
            mx_ref[...] = jnp.maximum(mx_ref[...], tile)
    else:
        mx_ref[...] = jnp.maximum(mx_ref[...], fm_ref[...])

    @pl.when(j == last)
    def _finalize():
        pooled = jnp.max(mx_ref[...], axis=-1).astype(jnp.float32)        # (tb, C2)
        out_ref[...] = jnp.dot(pooled, gt_ref[...],
                               preferred_element_type=jnp.float32)        # (tb, N)


def mlgcn_forward(feature_map, word_features, adj, w1, w2, *, tb=None, thw=None):
    """MLGCN forward.

    feature_map: (B, C2, H, W) backbone output, streamed as-is in its own
    dtype (pass bf16 from the backbone on bandwidth-limited v5e/v6e; the max
    selection is exact, both matmuls accumulate in f32).
    """
    B, C2, H, W = feature_map.shape
    N = word_features.shape[0]
    HW = H * W

    # ---- GCN branch once; result already (C2, N) so the classifier matmul's
    # contraction dim sits on sublanes with no transpose anywhere.
    g_t = _gcn(word_features, adj, w1, w2)                     # (C2, N) f32

    # ---- Free reshape; NO transpose / cast of the big feature map.
    fm = feature_map.reshape(B, C2, HW)
    itemsize = jnp.dtype(fm.dtype).itemsize

    # ---- Batch tile.  Out-block rule: second-minor block dim must be a
    # multiple of 8 or the full dim, so tb is 8 (>= 2 parallel tiles for v7x
    # megacore when B > 8) or the full batch.
    if tb is None:
        tb = 8 if B > 8 else B
    nb = pl.cdiv(B, tb)
    # NOTE: if B % tb != 0 the last batch tile streams padded/garbage rows
    # through the pool+matmul; those rows are discarded by Pallas' partial
    # output-block write masking, so visible results stay correct.

    # ---- Spatial tile.  Collapse the spatial grid whenever the full-HW block
    # fits the per-block budget (typical ResNet feature maps do).
    c2_pad = _round_up(C2, 8)
    hw_pad = _round_up(HW, 128)
    SINGLE_SHOT_BLOCK_BYTES = 18 * 1024 * 1024   # full-HW block budget (x2 buffers)
    TILED_BLOCK_BYTES = 12 * 1024 * 1024         # per-block target when tiling
    if thw is None:
        if tb * c2_pad * hw_pad * itemsize <= SINGLE_SHOT_BLOCK_BYTES:
            thw = HW
        else:
            cand = TILED_BLOCK_BYTES // (tb * c2_pad * itemsize)
            thw = max(128, (cand // 128) * 128)   # lane dim: multiple of 128
    single_shot = thw >= HW
    if single_shot:
        thw = HW

    # ---- Explicit VMEM budget (keeps the 2-deep pipeline on v7x's 64 MiB).
    thw_pad = _round_up(thw, 128)
    n_pad = _round_up(N, 128)
    fm_block_bytes = tb * c2_pad * thw_pad * itemsize
    gt_bytes = c2_pad * n_pad * 4
    out_bytes = _round_up(tb, 8) * n_pad * 4
    scratch_bytes = 0 if single_shot else tb * c2_pad * thw_pad * itemsize
    vmem_need = 2 * fm_block_bytes + scratch_bytes + gt_bytes + 2 * out_bytes
    vmem_limit = int(max(16 << 20, min(48 << 20, vmem_need + (4 << 20))))

    if single_shot:
        grid = (nb,)
        kernel = _pool_cls_single_kernel
        in_specs = [
            pl.BlockSpec((tb, C2, HW), lambda i: (i, 0, 0)),
            # Resident classifier matrix: block index never changes, so a
            # single buffer suffices.
            pl.BlockSpec((C2, N), lambda i: (0, 0), pipeline_mode=pl.Buffered(1)),
        ]
        out_specs = pl.BlockSpec((tb, N), lambda i: (i, 0))
        scratch_shapes = ()
        dims = ("parallel",)
    else:
        ns = pl.cdiv(HW, thw)
        grid = (nb, ns)
        kernel = functools.partial(_pool_cls_tiled_kernel, hw_total=HW)
        in_specs = [
            pl.BlockSpec((tb, C2, thw), lambda i, j: (i, 0, j)),
            pl.BlockSpec((C2, N), lambda i, j: (0, 0), pipeline_mode=pl.Buffered(1)),
        ]
        out_specs = pl.BlockSpec((tb, N), lambda i, j: (i, 0))
        scratch_shapes = (pltpu.VMEM((tb, C2, thw), fm.dtype),)
        dims = ("parallel", "arbitrary")

    out = pl.pallas_call(
        kernel,
        out_shape=jax.ShapeDtypeStruct((B, N), jnp.float32),
        grid=grid,
        in_specs=in_specs,
        out_specs=out_specs,
        scratch_shapes=scratch_shapes,
        compiler_params=pltpu.CompilerParams(
            dimension_semantics=dims,
            vmem_limit_bytes=vmem_limit),
    )(fm, g_t)
    return out


# ----------------------- parameter / adj construction (glue) ----------------
def gen_A_synth(num_classes, t, key):
    """Same math as gen_A but on deterministic synthetic co-occurrence stats."""
    k1, k2 = jax.random.split(key)
    cooc = jax.random.uniform(k1, (num_classes, num_classes),
                              minval=0.0, maxval=10.0, dtype=jnp.float32)
    nums = jax.random.uniform(k2, (num_classes, 1),
                              minval=5.0, maxval=15.0, dtype=jnp.float32)
    _adj = cooc / nums
    _adj = jnp.where(_adj < t, 0.0, 1.0)
    _adj = _adj * 0.25 / (_adj.sum(0, keepdims=True) + 1e-6)
    _adj = _adj + jnp.eye(num_classes, dtype=jnp.float32)
    return _adj


def gen_adj(A):
    D = jnp.power(A.sum(1), -0.5)
    D = jnp.diag(D)
    return jnp.matmul(jnp.matmul(A, D).T, D)


if __name__ == "__main__":
    # Small shapes consistent with the module (scaled-down dims):
    #   num_classes=8, word_feature_dim=32 (300 in module),
    #   gc1 out=64 (1024 in module), gc2 out = backbone channels = 128 (2048).
    B, N = 2, 8
    D_WORD, C1, C2 = 32, 64, 128
    H = W = 16

    key = jax.random.PRNGKey(0)
    ks = jax.random.split(key, 6)

    # Backbone output feature map (stands in for ResNet layer4 activations).
    feature_map = jax.random.normal(ks[0], (B, C2, H, W), dtype=jnp.float32)
    # Synthetic glove word features.
    word_features = jax.random.normal(ks[1], (N, D_WORD), dtype=jnp.float32)
    # Adjacency (gen_A + gen_adj).
    A = gen_A_synth(N, 0.4, ks[2])
    adj = gen_adj(A).astype(jnp.float32)

    # GraphConvolution weights, PyTorch init: uniform(-1/sqrt(out), 1/sqrt(out)).
    stdv1 = 1.0 / math.sqrt(C1)
    w1 = jax.random.uniform(ks[3], (D_WORD, C1), minval=-stdv1, maxval=stdv1,
                            dtype=jnp.float32)
    stdv2 = 1.0 / math.sqrt(C2)
    w2 = jax.random.uniform(ks[4], (C1, C2), minval=-stdv2, maxval=stdv2,
                            dtype=jnp.float32)

    def reference(fmap):
        pooled = jnp.max(fmap.astype(jnp.float32).reshape(fmap.shape[0], C2, -1),
                         axis=-1)
        x1 = adj @ (word_features @ w1)
        x1 = jnp.where(x1 > 0, x1, 0.2 * x1)
        x2 = adj @ (x1 @ w2)
        return pooled @ x2.T

    # 1) Default path: full-HW block, no spatial grid, no accumulator.
    out1 = jax.block_until_ready(
        mlgcn_forward(feature_map, word_features, adj, w1, w2))
    ref1 = reference(feature_map)
    assert out1.shape == (B, N)
    assert np.allclose(np.asarray(out1), np.asarray(ref1), atol=1e-3, rtol=1e-3)

    # 2) Forced spatial tiling (HW=256, thw=128: exact division, no masking).
    out2 = jax.block_until_ready(
        mlgcn_forward(feature_map, word_features, adj, w1, w2, thw=128))
    assert np.allclose(np.asarray(out2), np.asarray(ref1), atol=1e-3, rtol=1e-3)

    # 3) Non-128-aligned spatial extent (HW = 14*14 = 196): default single-shot
    #    path (unaligned lane reduce) and forced tiling with a masked partial
    #    last tile.
    fmap14 = jax.random.normal(ks[5], (B, C2, 14, 14), dtype=jnp.float32)
    ref3 = reference(fmap14)
    out3 = jax.block_until_ready(
        mlgcn_forward(fmap14, word_features, adj, w1, w2))
    assert np.allclose(np.asarray(out3), np.asarray(ref3), atol=1e-3, rtol=1e-3)
    out4 = jax.block_until_ready(
        mlgcn_forward(fmap14, word_features, adj, w1, w2, thw=128))
    assert np.allclose(np.asarray(out4), np.asarray(ref3), atol=1e-3, rtol=1e-3)

    # 4) bf16-streamed feature map (the cast belongs in the backbone output;
    #    reference pools the same bf16-rounded values).
    fmap_bf16 = feature_map.astype(jnp.bfloat16)
    ref5 = reference(fmap_bf16)
    out5 = jax.block_until_ready(
        mlgcn_forward(fmap_bf16, word_features, adj, w1, w2))
    assert np.allclose(np.asarray(out5), np.asarray(ref5), atol=2e-3, rtol=2e-3)

    print("KERNEL_OK")
</pallas_src>

<mosaic_0001>
module attributes {stable_mosaic.version = 11 : i64} {
  func.func @_gcn_kernel(%arg0: memref<8x32xf32, #tpu.memory_space<vmem>>, %arg1: memref<8x8xf32, #tpu.memory_space<vmem>>, %arg2: memref<32x64xf32, #tpu.memory_space<vmem>>, %arg3: memref<64x128xf32, #tpu.memory_space<vmem>>, %arg4: memref<128x8xf32, #tpu.memory_space<vmem>>) attributes {dimension_semantics = [], scalar_prefetch = 0 : i64, scratch_operands = 0 : i64, tpu.core_type = #tpu.core_type<tc>} {
    %c0 = arith.constant 0 : index
    %c0_0 = arith.constant 0 : index
    %0 = vector.load %arg0[%c0, %c0_0] : memref<8x32xf32, #tpu.memory_space<vmem>>, vector<8x32xf32>
    %c0_1 = arith.constant 0 : index
    %c0_2 = arith.constant 0 : index
    %1 = vector.load %arg2[%c0_1, %c0_2] : memref<32x64xf32, #tpu.memory_space<vmem>>, vector<32x64xf32>
    %cst = arith.constant dense<0.000000e+00> : vector<8x64xf32>
    %2 = tpu.matmul %0, %1, %cst {dimension_numbers = #tpu.dot_dimension_numbers<[1], [0], [0], [1], [0, 0, 1, 1], [], []>} : vector<8x32xf32>, vector<32x64xf32>, vector<8x64xf32> -> vector<8x64xf32>
    %c0_3 = arith.constant 0 : index
    %c0_4 = arith.constant 0 : index
    %3 = vector.load %arg1[%c0_3, %c0_4] : memref<8x8xf32, #tpu.memory_space<vmem>>, vector<8x8xf32>
    %cst_5 = arith.constant dense<0.000000e+00> : vector<8x64xf32>
    %4 = tpu.matmul %3, %2, %cst_5 {dimension_numbers = #tpu.dot_dimension_numbers<[1], [0], [0], [1], [0, 0, 1, 1], [], []>} : vector<8x8xf32>, vector<8x64xf32>, vector<8x64xf32> -> vector<8x64xf32>
    %cst_6 = arith.constant 0.000000e+00 : f32
    %5 = vector.broadcast %cst_6 : f32 to vector<8x64xf32>
    %6 = arith.cmpf ogt, %4, %5 : vector<8x64xf32>
    %cst_7 = arith.constant 2.000000e-01 : f32
    %7 = vector.broadcast %cst_7 : f32 to vector<8x64xf32>
    %8 = arith.mulf %7, %4 : vector<8x64xf32>
    %9 = arith.select %6, %4, %8 : vector<8x64xi1>, vector<8x64xf32>
    %c0_8 = arith.constant 0 : index
    %c0_9 = arith.constant 0 : index
    %10 = vector.load %arg3[%c0_8, %c0_9] : memref<64x128xf32, #tpu.memory_space<vmem>>, vector<64x128xf32>
    %cst_10 = arith.constant dense<0.000000e+00> : vector<8x128xf32>
    %11 = tpu.matmul %9, %10, %cst_10 {dimension_numbers = #tpu.dot_dimension_numbers<[1], [0], [0], [1], [0, 0, 1, 1], [], []>} : vector<8x64xf32>, vector<64x128xf32>, vector<8x128xf32> -> vector<8x128xf32>
    %c0_11 = arith.constant 0 : index
    %c0_12 = arith.constant 0 : index
    %12 = vector.load %arg1[%c0_11, %c0_12] : memref<8x8xf32, #tpu.memory_space<vmem>>, vector<8x8xf32>
    %cst_13 = arith.constant dense<0.000000e+00> : vector<8x128xf32>
    %13 = tpu.matmul %12, %11, %cst_13 {dimension_numbers = #tpu.dot_dimension_numbers<[1], [0], [0], [1], [0, 0, 1, 1], [], []>} : vector<8x8xf32>, vector<8x128xf32>, vector<8x128xf32> -> vector<8x128xf32>
    %14 = tpu.transpose %13, [1, 0] : vector<8x128xf32> -> vector<128x8xf32>
    %c0_14 = arith.constant 0 : index
    %c0_15 = arith.constant 0 : index
    %15 = vector.load %arg4[%c0_14, %c0_15] : memref<128x8xf32, #tpu.memory_space<vmem>>, vector<128x8xf32>
    tpu.vector_store %arg4[%c0_14, %c0_15], %14 {strides = array<i32>} : memref<128x8xf32, #tpu.memory_space<vmem>>, vector<128x8xf32>,
    return
  }
}

</mosaic_0001>

<llo_original>
// kernel: tpu_custom_call.1
$region0: #{tpu_custom_call.1}
  #allocation0 [shape = 'u32[]', space=smem, size = 0x4, offset = 0x4, fixed_abs, tag = 'smem constant byte address 0x4 - core index']
  #allocation1 [shape = 'u32[72,128]{1,0:T(1,128)}', space=vmem, size = 0x9000, scoped, tag = 'internal scratch']
  %s0 = inlined_call_operand.hbm [shape: f32[8,32], index: 0, kind: input, shape index: {}]
  %s1 = inlined_call_operand.hbm [shape: f32[8,8], index: 1, kind: input, shape index: {}]
  %s2 = inlined_call_operand.hbm [shape: f32[32,64], index: 2, kind: input, shape index: {}]
  %s3 = inlined_call_operand.hbm [shape: f32[64,128], index: 3, kind: input, shape index: {}]
  %s4 = inlined_call_operand.vmem [shape: f32[128,8], index: 4, kind: output, shape index: {}]
  %s5 = sld [smem:[#allocation0]]
  $region42: #{tpu_custom_call.1} parent=0
    _
  %s7 = ssub.s32 1, %s5
  %s8 = scalar_select 0, %s7, %s5
  $region1: #{tpu_custom_call.1} parent=0
    #allocation2 [shape = 'u8[4096]{0}', space=vmem, size = 0x1000, scoped, tag = 'input window, operand 0, single buffered']
    #allocation3 [shape = 's32[1]{0}', space=sflag, size = 0x4, scoped, tag = 'scoped memory for tpu_custom_call.1']
    #allocation4 [shape = 'u8[4096]{0}', space=vmem, size = 0x1000, scoped, tag = 'input window, operand 1, single buffered']
    #allocation5 [shape = 's32[1]{0}', space=sflag, size = 0x4, scoped, tag = 'scoped memory for tpu_custom_call.1']
    #allocation6 [shape = 'u8[16384]{0}', space=vmem, size = 0x4000, scoped, tag = 'input window, operand 2, single buffered']
    #allocation7 [shape = 'u8[32768]{0}', space=vmem, size = 0x8000, scoped, tag = 'input window, operand 3, single buffered']
    #allocation8 [shape = 's32[1]{0}', space=sflag, size = 0x4, scoped, tag = 'scoped memory for tpu_custom_call.1']
    %9 = vsyncpa [#allocation3], 0
    %10 = vsyncpa [#allocation5], 0
    %11 = vsyncpa [#allocation8], 0
    // Predicated region
    $region2: #{tpu_custom_call.1} parent=1 // pred_check
      _
    $region3: #{tpu_custom_call.1} parent=1 // pred_check_branch
      %13 = sbr.rel (0) target = $region5
    $region4: #{tpu_custom_call.1} parent=1 // pred_region
      %15 = vsyncadd [#allocation3], 0
      %s17 = sshll.u32 %s0, 4
      %s18 = int_to_ptr.hbm [resolvable:$true] %s17
      %s19 = sshll.u32 [#allocation2], 4
      %s20 = int_to_ptr.vmem [resolvable:$true] %s19
      %22 = dma.hbm_to_vmem [thread:$0]  %s18, 128, %s20, [#allocation3]
    $region5: #{tpu_custom_call.1} parent=1 // pred_fallthru
      _
    // Predicated region
    $region6: #{tpu_custom_call.1} parent=1 // pred_check
      _
    $region7: #{tpu_custom_call.1} parent=1 // pred_check_branch
      %24 = sbr.rel (0) target = $region9
    $region8: #{tpu_custom_call.1} parent=1 // pred_region
      %26 = vsyncadd [#allocation5], 0
      %s28 = sshll.u32 %s1, 4
      %s29 = int_to_ptr.hbm [resolvable:$true] %s28
      %s30 = sshll.u32 [#allocation4], 4
      %s31 = int_to_ptr.vmem [resolvable:$true] %s30
      %33 = dma.hbm_to_vmem [thread:$0]  %s29, 128, %s31, [#allocation5]
    $region9: #{tpu_custom_call.1} parent=1 // pred_fallthru
      _
    // Predicated region
    $region10: #{tpu_custom_call.1} parent=1 // pred_check
      _
    $region11: #{tpu_custom_call.1} parent=1 // pred_check_branch
      %35 = sbr.rel (0) target = $region13
    $region12: #{tpu_custom_call.1} parent=1 // pred_region
      %37 = vsyncadd [#allocation5], 0
      %s38 = sshll.u32 %s2, 4
      %s39 = int_to_ptr.hbm [resolvable:$true] %s38
      %s40 = sshll.u32 [#allocation6], 4
      %s41 = int_to_ptr.vmem [resolvable:$true] %s40
      %46 = dma.hbm_to_vmem [thread:$0]  %s39, 512, %s41, [#allocation5], 128, 128, 8
    $region13: #{tpu_custom_call.1} parent=1 // pred_fallthru
      _
    // Predicated region
    $region14: #{tpu_custom_call.1} parent=1 // pred_check
      _
    $region15: #{tpu_custom_call.1} parent=1 // pred_check_branch
      %48 = sbr.rel (0) target = $region17
    $region16: #{tpu_custom_call.1} parent=1 // pred_region
      %50 = vsyncadd [#allocation8], 0
      %s51 = sshll.u32 %s3, 4
      %s52 = int_to_ptr.hbm [resolvable:$true] %s51
      %s53 = sshll.u32 [#allocation7], 4
      %s54 = int_to_ptr.vmem [resolvable:$true] %s53
      %59 = dma.hbm_to_vmem [thread:$0]  %s52, 1024, %s54, [#allocation8], 128, 128, 8
    $region17: #{tpu_custom_call.1} parent=1 // pred_fallthru
      _
    // Predicated region
    $region18: #{tpu_custom_call.1} parent=1 // pred_check
      _
    $region19: #{tpu_custom_call.1} parent=1 // pred_check_branch
      %61 = sbr.rel (0) target = $region21
    $region20: #{tpu_custom_call.1} parent=1 // pred_region
      %63 = dma.done [#allocation3], 128
    $region21: #{tpu_custom_call.1} parent=1 // pred_fallthru
      _
    // Predicated region
    $region22: #{tpu_custom_call.1} parent=1 // pred_check
      _
    $region23: #{tpu_custom_call.1} parent=1 // pred_check_branch
      %65 = sbr.rel (0) target = $region25
    $region24: #{tpu_custom_call.1} parent=1 // pred_region
      %67 = dma.done [#allocation5], 128
    $region25: #{tpu_custom_call.1} parent=1 // pred_fallthru
      _
    // Predicated region
    $region26: #{tpu_custom_call.1} parent=1 // pred_check
      _
    $region27: #{tpu_custom_call.1} parent=1 // pred_check_branch
      %69 = sbr.rel (0) target = $region29
    $region28: #{tpu_custom_call.1} parent=1 // pred_region
      %71 = dma.done [#allocation5], 512
    $region29: #{tpu_custom_call.1} parent=1 // pred_fallthru
      _
    // Predicated region
    $region30: #{tpu_custom_call.1} parent=1 // pred_check
      _
    $region31: #{tpu_custom_call.1} parent=1 // pred_check_branch
      %73 = sbr.rel (0) target = $region33
    $region32: #{tpu_custom_call.1} parent=1 // pred_region
      %75 = dma.done [#allocation8], 1024
    $region33: #{tpu_custom_call.1} parent=1 // pred_fallthru
      _
    %v76 = vld [vmem:[#allocation2] sm:$0xff]
    %v77 = vld [vmem:[#allocation6] sm:$0xff]
    %v78 = vld [vmem:[#allocation6 + $0x8] sm:$0xff]
    %v79 = vld [vmem:[#allocation6 + $0x10] sm:$0xff]
    %v80 = vld [vmem:[#allocation6 + $0x18] sm:$0xff]
    %vm81 = vcmask 261120
    %v83 = vsel %vm81, %v76, 0
    %85 = vmatpush.msra.mxu0 0.0
    %86 = vmatpush.msra.mxu0 0.0
    %87 = vmatpush.msra.mxu0 0.0
    %88 = vmatpush.msra.mxu0 0.0
    %89 = vmatpush.msra.mxu0 0.0
    %90 = vmatpush.msra.mxu0 0.0
    %91 = vmatpush.msra.mxu0 0.0
    %92 = vmatpush.msra.mxu0 0.0
    %93 = vmatpush.msra.mxu0 0.0
    %94 = vmatpush.msra.mxu0 0.0
    %95 = vmatpush.msra.mxu0 0.0
    %96 = vmatpush.msra.mxu0 0.0
    %97 = vmatpush.msra.mxu0 %v80
    %98 = vmatpush.msra.mxu0 %v79
    %99 = vmatpush.msra.mxu0 %v78
    %100 = vmatpush.msra.mxu0 %v77
    %101 = vmatmul.f32.gmra.mxu0 %v83
    %v102 = vpop.f32.mrf.mxu0
    %v103 = vadd.f32 0.0, %v102
    %104 = vdwg.mxu0
    %v105 = vld [vmem:[#allocation4] sm:$0xff]
    %vm106 = vcmask 64512
    %v108 = vsel %vm106, %v105, 0
    %110 = vmatpush.msra.mxu0 0.0
    %111 = vmatpush.msra.mxu0 0.0
    %112 = vmatpush.msra.mxu0 0.0
    %113 = vmatpush.msra.mxu0 0.0
    %114 = vmatpush.msra.mxu0 0.0
    %115 = vmatpush.msra.mxu0 0.0
    %116 = vmatpush.msra.mxu0 0.0
    %117 = vmatpush.msra.mxu0 0.0
    %118 = vmatpush.msra.mxu0 0.0
    %119 = vmatpush.msra.mxu0 0.0
    %120 = vmatpush.msra.mxu0 0.0
    %121 = vmatpush.msra.mxu0 0.0
    %122 = vmatpush.msra.mxu0 0.0
    %123 = vmatpush.msra.mxu0 0.0
    %124 = vmatpush.msra.mxu0 0.0
    %125 = vmatpush.msra.mxu0 %v103
    %126 = vmatmul.f32.gmra.mxu0 %v108
    %v127 = vpop.f32.mrf.mxu0
    %v128 = vadd.f32 0.0, %v127
    %129 = vdwg.mxu0
    %vm130 = vcmp.gt.f32.partialorder %v128, 0.0
    %v131 = vmul.f32 %v128, 0.2
    %v132 = vsel %vm130, %v128, %v131
    %v133 = vld [vmem:[#allocation7] sm:$0xff]
    %v134 = vld [vmem:[#allocation7 + $0x8] sm:$0xff]
    %v135 = vld [vmem:[#allocation7 + $0x10] sm:$0xff]
    %v136 = vld [vmem:[#allocation7 + $0x18] sm:$0xff]
    %v137 = vld [vmem:[#allocation7 + $0x20] sm:$0xff]
    %v138 = vld [vmem:[#allocation7 + $0x28] sm:$0xff]
    %v139 = vld [vmem:[#allocation7 + $0x30] sm:$0xff]
    %v140 = vld [vmem:[#allocation7 + $0x38] sm:$0xff]
    %vm141 = vcmask 523264
    %v143 = vsel %vm141, %v132, 0
    %145 = vmatpush.msra.mxu0 0.0
    %146 = vmatpush.msra.mxu0 0.0
    %147 = vmatpush.msra.mxu0 0.0
    %148 = vmatpush.msra.mxu0 0.0
    %149 = vmatpush.msra.mxu0 0.0
    %150 = vmatpush.msra.mxu0 0.0
    %151 = vmatpush.msra.mxu0 0.0
    %152 = vmatpush.msra.mxu0 0.0
    %153 = vmatpush.msra.mxu0 %v140
    %154 = vmatpush.msra.mxu0 %v139
    %155 = vmatpush.msra.mxu0 %v138
    %156 = vmatpush.msra.mxu0 %v137
    %157 = vmatpush.msra.mxu0 %v136
    %158 = vmatpush.msra.mxu0 %v135
    %159 = vmatpush.msra.mxu0 %v134
    %160 = vmatpush.msra.mxu0 %v133
    %161 = vmatmul.f32.gmra.mxu0 %v143
    %v162 = vpop.f32.mrf.mxu0
    %v163 = vadd.f32 0.0, %v162
    %164 = vdwg.mxu0
    %165 = vmatpush.msra.mxu0 0.0
    %166 = vmatpush.msra.mxu0 0.0
    %167 = vmatpush.msra.mxu0 0.0
    %168 = vmatpush.msra.mxu0 0.0
    %169 = vmatpush.msra.mxu0 0.0
    %170 = vmatpush.msra.mxu0 0.0
    %171 = vmatpush.msra.mxu0 0.0
    %172 = vmatpush.msra.mxu0 0.0
    %173 = vmatpush.msra.mxu0 0.0
    %174 = vmatpush.msra.mxu0 0.0
    %175 = vmatpush.msra.mxu0 0.0
    %176 = vmatpush.msra.mxu0 0.0
    %177 = vmatpush.msra.mxu0 0.0
    %178 = vmatpush.msra.mxu0 0.0
    %179 = vmatpush.msra.mxu0 0.0
    %180 = vmatpush.msra.mxu0 %v163
    %181 = vmatmul.f32.gmra.mxu0 %v108
    %v182 = vpop.f32.mrf.mxu0
    %v183 = vadd.f32 0.0, %v182
    %184 = vdwg.mxu0
    %185 = vxpose.xlu0.b32.start [1/16] %v183, 128
    %186 = vxpose.xlu0.b32.cont [2/16] 0.0, 128
    %187 = vxpose.xlu0.b32.cont [3/16] 0.0, 128
    %188 = vxpose.xlu0.b32.cont [4/16] 0.0, 128
    %189 = vxpose.xlu0.b32.cont [5/16] 0.0, 128
    %190 = vxpose.xlu0.b32.cont [6/16] 0.0, 128
    %191 = vxpose.xlu0.b32.cont [7/16] 0.0, 128
    %192 = vxpose.xlu0.b32.cont [8/16] 0.0, 128
    %193 = vxpose.xlu0.b32.cont [9/16] 0.0, 128
    %194 = vxpose.xlu0.b32.cont [10/16] 0.0, 128
    %195 = vxpose.xlu0.b32.cont [11/16] 0.0, 128
    %196 = vxpose.xlu0.b32.cont [12/16] 0.0, 128
    %197 = vxpose.xlu0.b32.cont [13/16] 0.0, 128
    %198 = vxpose.xlu0.b32.cont [14/16] 0.0, 128
    %199 = vxpose.xlu0.b32.cont [15/16] 0.0, 128
    %200 = vxpose.xlu0.b32.end [16/16] 0.0, 128
    %v201 = vpop.trf.xlu0
    %v202 = vpop.trf.xlu0
    %v203 = vpop.trf.xlu0
    %v204 = vpop.trf.xlu0
    %v205 = vpop.trf.xlu0
    %v206 = vpop.trf.xlu0
    %v207 = vpop.trf.xlu0
    %v208 = vpop.trf.xlu0
    %v209 = vpop.trf.xlu0
    %v210 = vpop.trf.xlu0
    %v211 = vpop.trf.xlu0
    %v212 = vpop.trf.xlu0
    %v213 = vpop.trf.xlu0
    %v214 = vpop.trf.xlu0
    %v215 = vpop.trf.xlu0
    %v216 = vpop.trf.xlu0
    %217 = vst.msk [vmem:[%s4] sm:$0xff] %vm106, %v201
    %218 = vst.msk [vmem:[%s4 + $0x8] sm:$0xff] %vm106, %v202
    %219 = vst.msk [vmem:[%s4 + $0x10] sm:$0xff] %vm106, %v203
    %220 = vst.msk [vmem:[%s4 + $0x18] sm:$0xff] %vm106, %v204
    %221 = vst.msk [vmem:[%s4 + $0x20] sm:$0xff] %vm106, %v205
    %222 = vst.msk [vmem:[%s4 + $0x28] sm:$0xff] %vm106, %v206
    %223 = vst.msk [vmem:[%s4 + $0x30] sm:$0xff] %vm106, %v207
    %224 = vst.msk [vmem:[%s4 + $0x38] sm:$0xff] %vm106, %v208
    %225 = vst.msk [vmem:[%s4 + $0x40] sm:$0xff] %vm106, %v209
    %226 = vst.msk [vmem:[%s4 + $0x48] sm:$0xff] %vm106, %v210
    %227 = vst.msk [vmem:[%s4 + $0x50] sm:$0xff] %vm106, %v211
    %228 = vst.msk [vmem:[%s4 + $0x58] sm:$0xff] %vm106, %v212
    %229 = vst.msk [vmem:[%s4 + $0x60] sm:$0xff] %vm106, %v213
    %230 = vst.msk [vmem:[%s4 + $0x68] sm:$0xff] %vm106, %v214
    %231 = vst.msk [vmem:[%s4 + $0x70] sm:$0xff] %vm106, %v215
    %232 = vst.msk [vmem:[%s4 + $0x78] sm:$0xff] %vm106, %v216
    // Predicated region
    $region34: #{tpu_custom_call.1} parent=1 // pred_check
      _
    $region35: #{tpu_custom_call.1} parent=1 // pred_check_branch
      %234 = sbr.rel (0) target = $region37
    $region36: #{tpu_custom_call.1} parent=1 // pred_region
      _
    $region37: #{tpu_custom_call.1} parent=1 // pred_fallthru
      _
    // Predicated region
    $region38: #{tpu_custom_call.1} parent=1 // pred_check
      _
    $region39: #{tpu_custom_call.1} parent=1 // pred_check_branch
      %236 = sbr.rel (0) target = $region41
    $region40: #{tpu_custom_call.1} parent=1 // pred_region
      _
    $region41: #{tpu_custom_call.1} parent=1 // pred_fallthru
      _
    %237 = vsyncpa [#allocation3], 1
    %238 = vsyncpa [#allocation5], 1
    %239 = vsyncpa [#allocation8], 1

</llo_original>
